<compile_context>
chip_gen: v7x
topology: tpu7x:2x2x1
jax: 0.10.0
libtpu: 0.0.40
codegen_flags: <defaults>
</compile_context>

<pallas_src>
import functools

import jax
import jax.numpy as jnp
from jax.experimental import pallas as pl
from jax.experimental.pallas import tpu as pltpu


def _aux_conv_kernel(x_ref, w1_ref, b1_ref, w2_ref, b2_ref, o_ref, *, W, Ho, Wo):
    # x_ref : (Bblk*Cin, S)          rows ordered (b, cin); lanes s = h*W + w
    # w1_ref: (3, Bblk*Ct, Bblk*Cin) per-tap block-diagonal 3x1-conv weights
    # b1_ref: (Bblk*Ct, 1)
    # w2_ref: (3, Bblk*Ct, Bblk*Ct)  per-tap block-diagonal 1x3-conv weights
    # b2_ref: (Bblk*Ct, 1)
    # o_ref : (Bblk*Ct, Ho*Wo)       rows (b, co); lanes h*Wo + w (PyTorch flatten order)
    l1 = Ho * W      # conv1 output lanes kept (every lane has h < Ho -> all valid)
    l2 = l1 - 2      # conv2 lanes computed; columns with w >= Wo are junk, dropped below

    x = x_ref[...].astype(jnp.float32)              # in-kernel cast (no wrapper copy)

    # ---- Conv2d(kernel=(3,1)) + bias + ReLU --------------------------------
    # Tap kh reads x[(b,cin), s + kh*W]; block-diagonal weights keep every
    # image's channels contracted only against its own rows.  One batched dot
    # per tap, accumulated in f32 (no per-image loop, no sublane-concat repack).
    y1 = b1_ref[...]
    for kh in range(3):                             # static 3-tap loop
        y1 = y1 + jnp.dot(w1_ref[kh], x[:, kh * W: kh * W + l1],
                          preferred_element_type=jnp.float32)
    y1 = jnp.maximum(y1, 0.0)                       # (Bblk*Ct, l1); Dropout(p=0) == id

    # ---- Conv2d(kernel=(1,3)) + bias + ReLU --------------------------------
    # Tap kw reads y1[(b,c), s + kw].
    y2 = b2_ref[...]
    for kw in range(3):
        y2 = y2 + jnp.dot(w2_ref[kw], y1[:, kw: kw + l2],
                          preferred_element_type=jnp.float32)
    y2 = jnp.maximum(y2, 0.0)                       # (Bblk*Ct, l2)

    # ---- Flatten (PyTorch (C, H', W') order), once on the batched block ----
    # Drop the w >= Wo lanes of every W-group: Ho lane slices total per step.
    out = jnp.concatenate([y2[:, h * W: h * W + Wo] for h in range(Ho)], axis=1)
    o_ref[...] = out.astype(o_ref.dtype)            # (Bblk*Ct, Ho*Wo), lane-dense store


def _pick_batch_block(B, Cin, Ct, cap):
    """Largest usable batch block <= cap; returns (batch_block, padded_B)."""
    cap = max(1, min(cap, B))
    # Prefer the largest divisor of B (no padding) whose blocks are 8-sublane
    # aligned, or that covers the whole batch (full-dim blocks are always legal).
    for bb in range(cap, 0, -1):
        aligned = (bb * Cin) % 8 == 0 and (bb * Ct) % 8 == 0
        if B % bb == 0 and (aligned or bb == B):
            if 2 * bb >= cap:
                return bb, B
            break
    # Otherwise pad the batch up to a multiple of an aligned block (never
    # fall back to batch_block=1).
    bb = cap
    while (bb * Cin) % 8 or (bb * Ct) % 8:
        bb += 1
    n = -(-B // bb)
    return bb, n * bb


def aux_conv_forward(x_nchw, w1, b1, w2, b2, *, batch_block_cap=32):
    """x_nchw: (B, Cin, H, W). w1: (Ct, Cin, 3, 1). w2: (Ct, Ct, 1, 3)."""
    B, Cin, H, W = x_nchw.shape
    Ct = w1.shape[0]
    assert H >= 3 and W >= 3, "AuxConv needs H >= 3 and W >= 3 (VALID 3x1 then 1x3)"
    Ho, Wo = H - 2, W - 2
    S = H * W

    bblk, Bp = _pick_batch_block(B, Cin, Ct, batch_block_cap)
    grid_n = Bp // bblk

    # Free metadata reshape of (padded) NCHW -> (Bp*Cin, S); rows ordered (b, cin).
    x4d = x_nchw
    if Bp != B:
        x4d = jnp.pad(x4d, ((0, Bp - B), (0, 0), (0, 0), (0, 0)))
    x2d = x4d.reshape(Bp * Cin, S)

    # Per-tap block-diagonal weights + per-block biases.  These depend only on
    # the (static) conv weights and bblk -> constant-folded under jit / can be
    # hoisted and reused across calls.
    eye = jnp.eye(bblk, dtype=jnp.float32)
    w1_t = jnp.transpose(w1[:, :, :, 0], (2, 0, 1)).astype(jnp.float32)   # (3, Ct, Cin)
    w2_t = jnp.transpose(w2[:, :, 0, :], (2, 0, 1)).astype(jnp.float32)   # (3, Ct, Ct)
    w1_blk = jnp.einsum('ab,koc->kaobc', eye, w1_t).reshape(3, bblk * Ct, bblk * Cin)
    w2_blk = jnp.einsum('ab,koc->kaobc', eye, w2_t).reshape(3, bblk * Ct, bblk * Ct)
    b1_blk = jnp.tile(b1.astype(jnp.float32), bblk).reshape(bblk * Ct, 1)
    b2_blk = jnp.tile(b2.astype(jnp.float32), bblk).reshape(bblk * Ct, 1)

    kernel = functools.partial(_aux_conv_kernel, W=W, Ho=Ho, Wo=Wo)

    out2d = pl.pallas_call(
        kernel,
        out_shape=jax.ShapeDtypeStruct((Bp * Ct, Ho * Wo), x_nchw.dtype),
        grid_spec=pltpu.PrefetchScalarGridSpec(
            num_scalar_prefetch=0,
            grid=(grid_n,),
            in_specs=[
                pl.BlockSpec((bblk * Cin, S), lambda i: (i, 0)),
                pl.BlockSpec((3, bblk * Ct, bblk * Cin), lambda i: (0, 0, 0)),
                pl.BlockSpec((bblk * Ct, 1), lambda i: (0, 0)),
                pl.BlockSpec((3, bblk * Ct, bblk * Ct), lambda i: (0, 0, 0)),
                pl.BlockSpec((bblk * Ct, 1), lambda i: (0, 0)),
            ],
            out_specs=pl.BlockSpec((bblk * Ct, Ho * Wo), lambda i: (i, 0)),
        ),
        compiler_params=pltpu.CompilerParams(
            dimension_semantics=("parallel",),
            vmem_limit_bytes=32 * 1024 * 1024),
    )(x2d, w1_blk, b1_blk, w2_blk, b2_blk)

    if Bp != B:
        out2d = out2d[: B * Ct]
    # Rows are already (b, co)-major and lanes are (h, w)-major -> this reshape
    # to the PyTorch flatten is free (no transpose / extra HBM pass).
    return out2d.reshape(B, Ct * Ho * Wo)


def _reference_forward(x_nchw, w1, b1, w2, b2):
    """Pure-JAX reference using lax conv, NCHW like PyTorch."""
    dn = jax.lax.conv_dimension_numbers(x_nchw.shape, w1.shape,
                                        ("NCHW", "OIHW", "NCHW"))
    y1 = jax.lax.conv_general_dilated(x_nchw, w1, (1, 1), "VALID",
                                      dimension_numbers=dn)
    y1 = jnp.maximum(y1 + b1[None, :, None, None], 0.0)
    dn2 = jax.lax.conv_dimension_numbers(y1.shape, w2.shape,
                                         ("NCHW", "OIHW", "NCHW"))
    y2 = jax.lax.conv_general_dilated(y1, w2, (1, 1), "VALID",
                                      dimension_numbers=dn2)
    y2 = jnp.maximum(y2 + b2[None, :, None, None], 0.0)
    return y2.reshape(y2.shape[0], -1)


if __name__ == "__main__":
    # Small deterministic setup: batch=2, in_channels=4, c_tag=8, spatial=16x16.
    B, Cin, Ct, H, W = 2, 4, 8, 16, 16

    key = jax.random.PRNGKey(0)
    kx, kw1, kb1, kw2, kb2 = jax.random.split(key, 5)

    x = jax.random.normal(kx, (B, Cin, H, W), jnp.float32)
    # Conv2d(in_channels, c_tag, kernel_size=(3,1)) -> weight (Ct, Cin, 3, 1)
    w1 = jax.random.normal(kw1, (Ct, Cin, 3, 1), jnp.float32) * 0.1
    b1 = jax.random.normal(kb1, (Ct,), jnp.float32) * 0.1
    # Conv2d(c_tag, c_tag, kernel_size=(1,3)) -> weight (Ct, Ct, 1, 3)
    w2 = jax.random.normal(kw2, (Ct, Ct, 1, 3), jnp.float32) * 0.1
    b2 = jax.random.normal(kb2, (Ct,), jnp.float32) * 0.1

    out = jax.jit(aux_conv_forward)(x, w1, b1, w2, b2)
    out = jax.block_until_ready(out)

    ref = _reference_forward(x, w1, b1, w2, b2)
    assert out.shape == (B, Ct * (H - 2) * (W - 2)), out.shape
    assert jnp.allclose(out, ref, atol=1e-4, rtol=1e-4), \
        float(jnp.max(jnp.abs(out - ref)))

    print("KERNEL_OK")
</pallas_src>

<mosaic_0001>
module attributes {stable_mosaic.version = 11 : i64} {
  func.func @_aux_conv_kernel(%arg0: i32, %arg1: memref<8x256xf32, #tpu.memory_space<vmem>>, %arg2: memref<3x16x8xf32, #tpu.memory_space<vmem>>, %arg3: memref<16x1xf32, #tpu.memory_space<vmem>>, %arg4: memref<3x16x16xf32, #tpu.memory_space<vmem>>, %arg5: memref<16x1xf32, #tpu.memory_space<vmem>>, %arg6: memref<16x196xf32, #tpu.memory_space<vmem>>) attributes {dimension_semantics = [#tpu.dimension_semantics<parallel>], iteration_bounds = array<i64: 1>, scalar_prefetch = 0 : i64, scratch_operands = 0 : i64, tpu.core_type = #tpu.core_type<tc>, window_params = [{transform_indices = @transform_0, window_bounds = array<i64: 8, 256>}, {pipeline_mode = #tpu.pipeline_mode<synchronous>, transform_indices = @transform_1, window_bounds = array<i64: 3, 16, 8>}, {pipeline_mode = #tpu.pipeline_mode<synchronous>, transform_indices = @transform_2, window_bounds = array<i64: 16, 1>}, {pipeline_mode = #tpu.pipeline_mode<synchronous>, transform_indices = @transform_3, window_bounds = array<i64: 3, 16, 16>}, {pipeline_mode = #tpu.pipeline_mode<synchronous>, transform_indices = @transform_4, window_bounds = array<i64: 16, 1>}, {transform_indices = @transform_5, window_bounds = array<i64: 16, 196>}]} {
    %c0 = arith.constant 0 : index
    %c0_0 = arith.constant 0 : index
    %0 = vector.load %arg1[%c0, %c0_0] : memref<8x256xf32, #tpu.memory_space<vmem>>, vector<8x256xf32>
    %c0_1 = arith.constant 0 : index
    %c0_2 = arith.constant 0 : index
    %1 = vector.load %arg3[%c0_1, %c0_2] : memref<16x1xf32, #tpu.memory_space<vmem>>, vector<16x1xf32>
    %c0_3 = arith.constant 0 : index
    %c0_4 = arith.constant 0 : index
    %c0_5 = arith.constant 0 : index
    %2 = vector.load %arg2[%c0_3, %c0_4, %c0_5] : memref<3x16x8xf32, #tpu.memory_space<vmem>>, vector<1x16x8xf32>
    %3 = vector.shape_cast %2 : vector<1x16x8xf32> to vector<16x8xf32>
    %4 = vector.extract_strided_slice %0 {offsets = [0, 0], sizes = [8, 224], strides = [1, 1]} : vector<8x256xf32> to vector<8x224xf32>
    %cst = arith.constant dense<0.000000e+00> : vector<16x224xf32>
    %5 = tpu.matmul %3, %4, %cst {dimension_numbers = #tpu.dot_dimension_numbers<[1], [0], [0], [1], [0, 0, 1, 1], [], []>} : vector<16x8xf32>, vector<8x224xf32>, vector<16x224xf32> -> vector<16x224xf32>
    %6 = vector.broadcast %1 : vector<16x1xf32> to vector<16x224xf32>
    %7 = arith.addf %6, %5 : vector<16x224xf32>
    %c1 = arith.constant 1 : index
    %c0_6 = arith.constant 0 : index
    %c0_7 = arith.constant 0 : index
    %8 = vector.load %arg2[%c1, %c0_6, %c0_7] : memref<3x16x8xf32, #tpu.memory_space<vmem>>, vector<1x16x8xf32>
    %9 = vector.shape_cast %8 : vector<1x16x8xf32> to vector<16x8xf32>
    %10 = vector.extract_strided_slice %0 {offsets = [0, 16], sizes = [8, 224], strides = [1, 1]} : vector<8x256xf32> to vector<8x224xf32>
    %cst_8 = arith.constant dense<0.000000e+00> : vector<16x224xf32>
    %11 = tpu.matmul %9, %10, %cst_8 {dimension_numbers = #tpu.dot_dimension_numbers<[1], [0], [0], [1], [0, 0, 1, 1], [], []>} : vector<16x8xf32>, vector<8x224xf32>, vector<16x224xf32> -> vector<16x224xf32>
    %12 = arith.addf %7, %11 : vector<16x224xf32>
    %c2 = arith.constant 2 : index
    %c0_9 = arith.constant 0 : index
    %c0_10 = arith.constant 0 : index
    %13 = vector.load %arg2[%c2, %c0_9, %c0_10] : memref<3x16x8xf32, #tpu.memory_space<vmem>>, vector<1x16x8xf32>
    %14 = vector.shape_cast %13 : vector<1x16x8xf32> to vector<16x8xf32>
    %15 = vector.extract_strided_slice %0 {offsets = [0, 32], sizes = [8, 224], strides = [1, 1]} : vector<8x256xf32> to vector<8x224xf32>
    %cst_11 = arith.constant dense<0.000000e+00> : vector<16x224xf32>
    %16 = tpu.matmul %14, %15, %cst_11 {dimension_numbers = #tpu.dot_dimension_numbers<[1], [0], [0], [1], [0, 0, 1, 1], [], []>} : vector<16x8xf32>, vector<8x224xf32>, vector<16x224xf32> -> vector<16x224xf32>
    %17 = arith.addf %12, %16 : vector<16x224xf32>
    %cst_12 = arith.constant 0.000000e+00 : f32
    %18 = vector.broadcast %cst_12 : f32 to vector<16x224xf32>
    %19 = arith.maximumf %17, %18 : vector<16x224xf32>
    %c0_13 = arith.constant 0 : index
    %c0_14 = arith.constant 0 : index
    %20 = vector.load %arg5[%c0_13, %c0_14] : memref<16x1xf32, #tpu.memory_space<vmem>>, vector<16x1xf32>
    %c0_15 = arith.constant 0 : index
    %c0_16 = arith.constant 0 : index
    %c0_17 = arith.constant 0 : index
    %21 = vector.load %arg4[%c0_15, %c0_16, %c0_17] : memref<3x16x16xf32, #tpu.memory_space<vmem>>, vector<1x16x16xf32>
    %22 = vector.shape_cast %21 : vector<1x16x16xf32> to vector<16x16xf32>
    %23 = vector.extract_strided_slice %19 {offsets = [0, 0], sizes = [16, 222], strides = [1, 1]} : vector<16x224xf32> to vector<16x222xf32>
    %cst_18 = arith.constant dense<0.000000e+00> : vector<16x222xf32>
    %24 = tpu.matmul %22, %23, %cst_18 {dimension_numbers = #tpu.dot_dimension_numbers<[1], [0], [0], [1], [0, 0, 1, 1], [], []>} : vector<16x16xf32>, vector<16x222xf32>, vector<16x222xf32> -> vector<16x222xf32>
    %25 = vector.broadcast %20 : vector<16x1xf32> to vector<16x222xf32>
    %26 = arith.addf %25, %24 : vector<16x222xf32>
    %c1_19 = arith.constant 1 : index
    %c0_20 = arith.constant 0 : index
    %c0_21 = arith.constant 0 : index
    %27 = vector.load %arg4[%c1_19, %c0_20, %c0_21] : memref<3x16x16xf32, #tpu.memory_space<vmem>>, vector<1x16x16xf32>
    %28 = vector.shape_cast %27 : vector<1x16x16xf32> to vector<16x16xf32>
    %29 = vector.extract_strided_slice %19 {offsets = [0, 1], sizes = [16, 222], strides = [1, 1]} : vector<16x224xf32> to vector<16x222xf32>
    %cst_22 = arith.constant dense<0.000000e+00> : vector<16x222xf32>
    %30 = tpu.matmul %28, %29, %cst_22 {dimension_numbers = #tpu.dot_dimension_numbers<[1], [0], [0], [1], [0, 0, 1, 1], [], []>} : vector<16x16xf32>, vector<16x222xf32>, vector<16x222xf32> -> vector<16x222xf32>
    %31 = arith.addf %26, %30 : vector<16x222xf32>
    %c2_23 = arith.constant 2 : index
    %c0_24 = arith.constant 0 : index
    %c0_25 = arith.constant 0 : index
    %32 = vector.load %arg4[%c2_23, %c0_24, %c0_25] : memref<3x16x16xf32, #tpu.memory_space<vmem>>, vector<1x16x16xf32>
    %33 = vector.shape_cast %32 : vector<1x16x16xf32> to vector<16x16xf32>
    %34 = vector.extract_strided_slice %19 {offsets = [0, 2], sizes = [16, 222], strides = [1, 1]} : vector<16x224xf32> to vector<16x222xf32>
    %cst_26 = arith.constant dense<0.000000e+00> : vector<16x222xf32>
    %35 = tpu.matmul %33, %34, %cst_26 {dimension_numbers = #tpu.dot_dimension_numbers<[1], [0], [0], [1], [0, 0, 1, 1], [], []>} : vector<16x16xf32>, vector<16x222xf32>, vector<16x222xf32> -> vector<16x222xf32>
    %36 = arith.addf %31, %35 : vector<16x222xf32>
    %cst_27 = arith.constant 0.000000e+00 : f32
    %37 = vector.broadcast %cst_27 : f32 to vector<16x222xf32>
    %38 = arith.maximumf %36, %37 : vector<16x222xf32>
    %39 = vector.extract_strided_slice %38 {offsets = [0, 0], sizes = [16, 14], strides = [1, 1]} : vector<16x222xf32> to vector<16x14xf32>
    %40 = vector.extract_strided_slice %38 {offsets = [0, 16], sizes = [16, 14], strides = [1, 1]} : vector<16x222xf32> to vector<16x14xf32>
    %41 = vector.extract_strided_slice %38 {offsets = [0, 32], sizes = [16, 14], strides = [1, 1]} : vector<16x222xf32> to vector<16x14xf32>
    %42 = vector.extract_strided_slice %38 {offsets = [0, 48], sizes = [16, 14], strides = [1, 1]} : vector<16x222xf32> to vector<16x14xf32>
    %43 = vector.extract_strided_slice %38 {offsets = [0, 64], sizes = [16, 14], strides = [1, 1]} : vector<16x222xf32> to vector<16x14xf32>
    %44 = vector.extract_strided_slice %38 {offsets = [0, 80], sizes = [16, 14], strides = [1, 1]} : vector<16x222xf32> to vector<16x14xf32>
    %45 = vector.extract_strided_slice %38 {offsets = [0, 96], sizes = [16, 14], strides = [1, 1]} : vector<16x222xf32> to vector<16x14xf32>
    %46 = vector.extract_strided_slice %38 {offsets = [0, 112], sizes = [16, 14], strides = [1, 1]} : vector<16x222xf32> to vector<16x14xf32>
    %47 = vector.extract_strided_slice %38 {offsets = [0, 128], sizes = [16, 14], strides = [1, 1]} : vector<16x222xf32> to vector<16x14xf32>
    %48 = vector.extract_strided_slice %38 {offsets = [0, 144], sizes = [16, 14], strides = [1, 1]} : vector<16x222xf32> to vector<16x14xf32>
    %49 = vector.extract_strided_slice %38 {offsets = [0, 160], sizes = [16, 14], strides = [1, 1]} : vector<16x222xf32> to vector<16x14xf32>
    %50 = vector.extract_strided_slice %38 {offsets = [0, 176], sizes = [16, 14], strides = [1, 1]} : vector<16x222xf32> to vector<16x14xf32>
    %51 = vector.extract_strided_slice %38 {offsets = [0, 192], sizes = [16, 14], strides = [1, 1]} : vector<16x222xf32> to vector<16x14xf32>
    %52 = vector.extract_strided_slice %38 {offsets = [0, 208], sizes = [16, 14], strides = [1, 1]} : vector<16x222xf32> to vector<16x14xf32>
    %53 = tpu.concatenate %39, %40, %41, %42, %43, %44, %45, %46, %47, %48, %49, %50, %51, %52 in 1 : vector<16x14xf32>, vector<16x14xf32>, vector<16x14xf32>, vector<16x14xf32>, vector<16x14xf32>, vector<16x14xf32>, vector<16x14xf32>, vector<16x14xf32>, vector<16x14xf32>, vector<16x14xf32>, vector<16x14xf32>, vector<16x14xf32>, vector<16x14xf32>, vector<16x14xf32> -> vector<16x196xf32>
    %c0_28 = arith.constant 0 : index
    %c0_29 = arith.constant 0 : index
    %54 = vector.load %arg6[%c0_28, %c0_29] : memref<16x196xf32, #tpu.memory_space<vmem>>, vector<16x196xf32>
    tpu.vector_store %arg6[%c0_28, %c0_29], %53 {strides = array<i32>} : memref<16x196xf32, #tpu.memory_space<vmem>>, vector<16x196xf32>,
    return
  }
  func.func @transform_0(%arg0: i32) -> (i32, i32) {
    %c0_i32 = arith.constant 0 : i32
    %c0_i32_0 = arith.constant 0 : i32
    return %arg0, %c0_i32 : i32, i32
  }
  func.func @transform_1(%arg0: i32) -> (i32, i32, i32) {
    %c0_i32 = arith.constant 0 : i32
    %c0_i32_0 = arith.constant 0 : i32
    %c0_i32_1 = arith.constant 0 : i32
    %c0_i32_2 = arith.constant 0 : i32
    return %c0_i32, %c0_i32_0, %c0_i32_1 : i32, i32, i32
  }
  func.func @transform_2(%arg0: i32) -> (i32, i32) {
    %c0_i32 = arith.constant 0 : i32
    %c0_i32_0 = arith.constant 0 : i32
    %c0_i32_1 = arith.constant 0 : i32
    return %c0_i32, %c0_i32_0 : i32, i32
  }
  func.func @transform_3(%arg0: i32) -> (i32, i32, i32) {
    %c0_i32 = arith.constant 0 : i32
    %c0_i32_0 = arith.constant 0 : i32
    %c0_i32_1 = arith.constant 0 : i32
    %c0_i32_2 = arith.constant 0 : i32
    return %c0_i32, %c0_i32_0, %c0_i32_1 : i32, i32, i32
  }
  func.func @transform_4(%arg0: i32) -> (i32, i32) {
    %c0_i32 = arith.constant 0 : i32
    %c0_i32_0 = arith.constant 0 : i32
    %c0_i32_1 = arith.constant 0 : i32
    return %c0_i32, %c0_i32_0 : i32, i32
  }
  func.func @transform_5(%arg0: i32) -> (i32, i32) {
    %c0_i32 = arith.constant 0 : i32
    %c0_i32_0 = arith.constant 0 : i32
    return %arg0, %c0_i32 : i32, i32
  }
}

</mosaic_0001>

<llo_original>
// kernel: tile.13
$region0: #{tile.13}
  #allocation0 [shape = 's32[1]{0}', space=sflag, size = 0x4, scoped, tag = 'scoped memory for tile.13']
  %s0 = inlined_call_operand.vmem [shape: f32[8], index: 0, kind: input, shape index: {}]
  %s1 = inlined_call_operand.vmem [shape: f32[2,8], index: 1, kind: output, shape index: {}]
  // Predicated region
  $region2: #{tile.13} parent=0 // pred_check
    _
  $region3: #{tile.13} parent=0 // pred_check_branch
    %3 = sbr.rel (0) target = $region5
  $region4: #{tile.13} parent=0 // pred_region
    _
  $region5: #{tile.13} parent=0 // pred_fallthru
    _
  %v4 = vld [vmem:[%s0] ss:$0 sm:$0xff]
  %5 = vst [vmem:[%s1] sm:$0x3] %v4

// kernel: tile.0
$region0: #{tile.0}
  %s0 = inlined_call_operand.vmem [shape: f32[2,8], index: 0, kind: input, shape index: {}]
  %s1 = inlined_call_operand.vmem [shape: f32[16,1], index: 1, kind: output, shape index: {}]
  $region1: #{tile.0} parent=0
    #allocation0 [shape = 'u8[4096]{0}', space=vmem, size = 0x1000, scoped, tag = 'scoped mem for input reshape']
    %s3 = sshllo.u32 0, 2
    %v4 = vld [vmem:[%s0] sm:%s3]
    %5 = vst [vmem:[#allocation0] sm:%s3] %v4
    %v6 = vld [vmem:[#allocation0] sm:$0x3]
    %vm7 = vcmask 7168
    %8 = vst.msk [vmem:[%s1] ss:$8 sm:$0x3] %vm7, %v6
    %v9 = vld [vmem:[#allocation0] sm:$0x3]
    %10 = vrot.lane.b32.xlu0 %v9, 127
    %v11 = vpop.permute.xlu0 %10
    %vm12 = vcmask 7168
    %s13 = scalar_lea.vmem %s1, 1
    %14 = vst.msk [vmem:[%s13] ss:$8 sm:$0x3] %vm12, %v11
    %v15 = vld [vmem:[#allocation0] sm:$0x3]
    %16 = vrot.lane.b32.xlu0 %v15, 126
    %v17 = vpop.permute.xlu0 %16
    %vm18 = vcmask 7168
    %s19 = scalar_lea.vmem %s1, 2
    %20 = vst.msk [vmem:[%s19] ss:$8 sm:$0x3] %vm18, %v17
    %v21 = vld [vmem:[#allocation0] sm:$0x3]
    %22 = vrot.lane.b32.xlu0 %v21, 125
    %v23 = vpop.permute.xlu0 %22
    %vm24 = vcmask 7168
    %s25 = scalar_lea.vmem %s1, 3
    %26 = vst.msk [vmem:[%s25] ss:$8 sm:$0x3] %vm24, %v23
    %v27 = vld [vmem:[#allocation0] sm:$0x3]
    %28 = vrot.lane.b32.xlu0 %v27, 124
    %v29 = vpop.permute.xlu0 %28
    %vm30 = vcmask 7168
    %s31 = scalar_lea.vmem %s1, 4
    %32 = vst.msk [vmem:[%s31] ss:$8 sm:$0x3] %vm30, %v29
    %v33 = vld [vmem:[#allocation0] sm:$0x3]
    %34 = vrot.lane.b32.xlu0 %v33, 123
    %v35 = vpop.permute.xlu0 %34
    %vm36 = vcmask 7168
    %s37 = scalar_lea.vmem %s1, 5
    %38 = vst.msk [vmem:[%s37] ss:$8 sm:$0x3] %vm36, %v35
    %v39 = vld [vmem:[#allocation0] sm:$0x3]
    %40 = vrot.lane.b32.xlu0 %v39, 122
    %v41 = vpop.permute.xlu0 %40
    %vm42 = vcmask 7168
    %s43 = scalar_lea.vmem %s1, 6
    %44 = vst.msk [vmem:[%s43] ss:$8 sm:$0x3] %vm42, %v41
    %v45 = vld [vmem:[#allocation0] sm:$0x3]
    %46 = vrot.lane.b32.xlu0 %v45, 121
    %v47 = vpop.permute.xlu0 %46
    %vm48 = vcmask 7168
    %s49 = scalar_lea.vmem %s1, 7
    %50 = vst.msk [vmem:[%s49] ss:$8 sm:$0x3] %vm48, %v47

// kernel: aux_conv_forward.1
$region0: #{aux_conv_forward.1}
  #allocation0 [shape = 'u32[]', space=smem, size = 0x4, offset = 0x4, fixed_abs, tag = 'smem constant byte address 0x4 - core index']
  #allocation1 [shape = 'u32[144,128]{1,0:T(1,128)}', space=vmem, size = 0x12000, scoped, tag = 'internal scratch']
  %s0 = inlined_call_operand.vmem [shape: f32[8,256], index: 0, kind: input, shape index: {}]
  %s1 = inlined_call_operand.vmem [shape: f32[3,16,8], index: 1, kind: input, shape index: {}]
  %s2 = inlined_call_operand.vmem [shape: f32[16,1], index: 2, kind: input, shape index: {}]
  %s3 = inlined_call_operand.vmem [shape: f32[3,16,16], index: 3, kind: input, shape index: {}]
  %s4 = inlined_call_operand.vmem [shape: f32[16,1], index: 4, kind: input, shape index: {}]
  %s5 = inlined_call_operand.vmem [shape: f32[16,196], index: 5, kind: output, shape index: {}]
  %s6 = sld [smem:[#allocation0]]
  $region30: #{aux_conv_forward.1} parent=0
    _
  %s8 = ssub.s32 1, %s6
  %s9 = scalar_select 0, %s8, %s6
  // Predicated region
  $region2: #{aux_conv_forward.1} parent=0 // pred_check
    _
  $region3: #{aux_conv_forward.1} parent=0 // pred_check_branch
    %11 = sbr.rel (0) target = $region5
  $region4: #{aux_conv_forward.1} parent=0 // pred_region
    _
  $region5: #{aux_conv_forward.1} parent=0 // pred_fallthru
    _
  // Predicated region
  $region6: #{aux_conv_forward.1} parent=0 // pred_check
    _
  $region7: #{aux_conv_forward.1} parent=0 // pred_check_branch
    %13 = sbr.rel (0) target = $region9
  $region8: #{aux_conv_forward.1} parent=0 // pred_region
    _
  $region9: #{aux_conv_forward.1} parent=0 // pred_fallthru
    _
  // Predicated region
  $region10: #{aux_conv_forward.1} parent=0 // pred_check
    _
  $region11: #{aux_conv_forward.1} parent=0 // pred_check_branch
    %15 = sbr.rel (0) target = $region13
  $region12: #{aux_conv_forward.1} parent=0 // pred_region
    _
  $region13: #{aux_conv_forward.1} parent=0 // pred_fallthru
    _
  // Predicated region
  $region14: #{aux_conv_forward.1} parent=0 // pred_check
    _
  $region15: #{aux_conv_forward.1} parent=0 // pred_check_branch
    %17 = sbr.rel (0) target = $region17
  $region16: #{aux_conv_forward.1} parent=0 // pred_region
    _
  $region17: #{aux_conv_forward.1} parent=0 // pred_fallthru
    _
  // Predicated region
  $region18: #{aux_conv_forward.1} parent=0 // pred_check
    _
  $region19: #{aux_conv_forward.1} parent=0 // pred_check_branch
    %19 = sbr.rel (0) target = $region21
  $region20: #{aux_conv_forward.1} parent=0 // pred_region
    _
  $region21: #{aux_conv_forward.1} parent=0 // pred_fallthru
    _
  %v20 = vld [vmem:[%s0] sm:$0xff]
  %v21 = vld [vmem:[%s0 + $0x8] sm:$0xff]
  %v22 = vld [vmem:[%s2] sm:$0xff]
  %v23 = vld [vmem:[%s2 + $0x8] sm:$0xff]
  %v24 = vld [vmem:[%s1] sm:$0xff]
  %v25 = vld [vmem:[%s1 + $0x8] sm:$0xff]
  %vm26 = vcmask 64512
  %v28 = vsel %vm26, %v24, 0
  %v31 = vsel %vm26, %v25, 0
  %33 = vmatprep.subr.mxu0 %v21
  %34 = vmatpush1.msra.mxu0 %v20
  %35 = vmatprep.subr.mxu0 0.0
  %36 = vmatpush1.msra.mxu0 0.0
  %37 = vmatprep.subr.mxu0 0.0
  %38 = vmatpush1.msra.mxu0 0.0
  %39 = vmatprep.subr.mxu0 0.0
  %40 = vmatpush1.msra.mxu0 0.0
  %41 = vmatprep.subr.mxu0 0.0
  %42 = vmatpush1.msra.mxu0 0.0
  %43 = vmatprep.subr.mxu0 0.0
  %44 = vmatpush1.msra.mxu0 0.0
  %45 = vmatprep.subr.mxu0 0.0
  %46 = vmatpush1.msra.mxu0 0.0
  %47 = vmatprep.subr.mxu0 0.0
  %48 = vmatpush1.msra.mxu0 0.0
  %49 = vmatprep.subr.mxu0 0.0
  %50 = vmatpush1.msra.mxu0 0.0
  %51 = vmatprep.subr.mxu0 0.0
  %52 = vmatpush1.msra.mxu0 0.0
  %53 = vmatprep.subr.mxu0 0.0
  %54 = vmatpush1.msra.mxu0 0.0
  %55 = vmatprep.subr.mxu0 0.0
  %56 = vmatpush1.msra.mxu0 0.0
  %57 = vmatprep.subr.mxu0 0.0
  %58 = vmatpush1.msra.mxu0 0.0
  %59 = vmatprep.subr.mxu0 0.0
  %60 = vmatpush1.msra.mxu0 0.0
  %61 = vmatprep.subr.mxu0 0.0
  %62 = vmatpush1.msra.mxu0 0.0
  %63 = vmatprep.subr.mxu0 0.0
  %64 = vmatpush1.msra.mxu0 0.0
  %65 = vmatprep.subr.mxu0 0.0
  %66 = vmatpush1.msra.mxu0 0.0
  %67 = vmatprep.subr.mxu0 0.0
  %68 = vmatpush1.msra.mxu0 0.0
  %69 = vmatprep.subr.mxu0 0.0
  %70 = vmatpush1.msra.mxu0 0.0
  %71 = vmatprep.subr.mxu0 0.0
  %72 = vmatpush1.msra.mxu0 0.0
  %73 = vmatprep.subr.mxu0 0.0
  %74 = vmatpush1.msra.mxu0 0.0
  %75 = vmatprep.subr.mxu0 0.0
  %76 = vmatpush1.msra.mxu0 0.0
  %77 = vmatprep.subr.mxu0 0.0
  %78 = vmatpush1.msra.mxu0 0.0
  %79 = vmatprep.subr.mxu0 0.0
  %80 = vmatpush1.msra.mxu0 0.0
  %81 = vmatprep.subr.mxu0 0.0
  %82 = vmatpush1.msra.mxu0 0.0
  %83 = vmatprep.subr.mxu0 0.0
  %84 = vmatpush1.msra.mxu0 0.0
  %85 = vmatprep.subr.mxu0 0.0
  %86 = vmatpush1.msra.mxu0 0.0
  %87 = vmatprep.subr.mxu0 0.0
  %88 = vmatpush1.msra.mxu0 0.0
  %89 = vmatprep.subr.mxu0 0.0
  %90 = vmatpush1.msra.mxu0 0.0
  %91 = vmatprep.subr.mxu0 0.0
  %92 = vmatpush1.msra.mxu0 0.0
  %93 = vmatprep.subr.mxu0 0.0
  %94 = vmatpush1.msra.mxu0 0.0
  %95 = vmatprep.subr.mxu0 0.0
  %96 = vmatpush1.msra.mxu0 0.0
  %97 = vmatprep.mubr.f32.mxu0 0.0
  %98 = vmatmul.mubr.f32.gmra.mrb[0].mxu0 %v28
  %v99 = vpop.f32.mrb[0].mxu0
  %v100 = vadd.f32 0.0, %v99
  %v101 = vpop.f32.mrb[0].mxu0
  %v102 = vadd.f32 0.0, %v101
  %103 = vmatprep.mubr.f32.mxu0 0.0
  %104 = vmatmul.mubr.f32.gmra.mrb[0].mxu0 %v31
  %v105 = vpop.f32.mrb[0].mxu0
  %v106 = vadd.f32 0.0, %v105
  %v107 = vpop.f32.mrb[0].mxu0
  %v108 = vadd.f32 0.0, %v107
  %109 = vdwg.mxu0
  %111 = vset.pattern.permute.xlu0 0
  %112 = vperm.xlu0 %111, %v22
  %v113 = vpop.permute.xlu0 %112
  %116 = vset.pattern.permute.xlu0 0
  %117 = vperm.xlu0 %116, %v23
  %v118 = vpop.permute.xlu0 %117
  %v120 = vadd.f32 %v113, %v100
  %v121 = vadd.f32 %v113, %v102
  %v122 = vadd.f32 %v118, %v106
  %v123 = vadd.f32 %v118, %v108
  %s124 = scalar_lea.vmem %s1, 16
  %v125 = vld [vmem:[%s124] sm:$0xff]
  %v126 = vld [vmem:[%s124 + $0x8] sm:$0xff]
  %129 = vrot.lane.b32.xlu0 %v20, 112
  %v130 = vpop.permute.xlu0 %129
  %131 = vrot.lane.b32.xlu0 %v21, 112
  %v132 = vpop.permute.xlu0 %131
  %vm133 = vcmask 916480
  %v134 = vsel %vm133, %v130, %v132
  %v138 = vsel %vm26, %v125, 0
  %v141 = vsel %vm26, %v126, 0
  %143 = vmatprep.subr.mxu0 %v132
  %144 = vmatpush1.msra.mxu0 %v134
  %145 = vmatprep.subr.mxu0 0.0
  %146 = vmatpush1.msra.mxu0 0.0
  %147 = vmatprep.subr.mxu0 0.0
  %148 = vmatpush1.msra.mxu0 0.0
  %149 = vmatprep.subr.mxu0 0.0
  %150 = vmatpush1.msra.mxu0 0.0
  %151 = vmatprep.subr.mxu0 0.0
  %152 = vmatpush1.msra.mxu0 0.0
  %153 = vmatprep.subr.mxu0 0.0
  %154 = vmatpush1.msra.mxu0 0.0
  %155 = vmatprep.subr.mxu0 0.0
  %156 = vmatpush1.msra.mxu0 0.0
  %157 = vmatprep.subr.mxu0 0.0
  %158 = vmatpush1.msra.mxu0 0.0
  %159 = vmatprep.subr.mxu0 0.0
  %160 = vmatpush1.msra.mxu0 0.0
  %161 = vmatprep.subr.mxu0 0.0
  %162 = vmatpush1.msra.mxu0 0.0
  %163 = vmatprep.subr.mxu0 0.0
  %164 = vmatpush1.msra.mxu0 0.0
  %165 = vmatprep.subr.mxu0 0.0
  %166 = vmatpush1.msra.mxu0 0.0
  %167 = vmatprep.subr.mxu0 0.0
  %168 = vmatpush1.msra.mxu0 0.0
  %169 = vmatprep.subr.mxu0 0.0
  %170 = vmatpush1.msra.mxu0 0.0
  %171 = vmatprep.subr.mxu0 0.0
  %172 = vmatpush1.msra.mxu0 0.0
  %173 = vmatprep.subr.mxu0 0.0
  %174 = vmatpush1.msra.mxu0 0.0
  %175 = vmatprep.subr.mxu0 0.0
  %176 = vmatpush1.msra.mxu0 0.0
  %177 = vmatprep.subr.mxu0 0.0
  %178 = vmatpush1.msra.mxu0 0.0
  %179 = vmatprep.subr.mxu0 0.0
  %180 = vmatpush1.msra.mxu0 0.0
  %181 = vmatprep.subr.mxu0 0.0
  %182 = vmatpush1.msra.mxu0 0.0
  %183 = vmatprep.subr.mxu0 0.0
  %184 = vmatpush1.msra.mxu0 0.0
  %185 = vmatprep.subr.mxu0 0.0
  %186 = vmatpush1.msra.mxu0 0.0
  %187 = vmatprep.subr.mxu0 0.0
  %188 = vmatpush1.msra.mxu0 0.0
  %189 = vmatprep.subr.mxu0 0.0
  %190 = vmatpush1.msra.mxu0 0.0
  %191 = vmatprep.subr.mxu0 0.0
  %192 = vmatpush1.msra.mxu0 0.0
  %193 = vmatprep.subr.mxu0 0.0
  %194 = vmatpush1.msra.mxu0 0.0
  %195 = vmatprep.subr.mxu0 0.0
  %196 = vmatpush1.msra.mxu0 0.0
  %197 = vmatprep.subr.mxu0 0.0
  %198 = vmatpush1.msra.mxu0 0.0
  %199 = vmatprep.subr.mxu0 0.0
  %200 = vmatpush1.msra.mxu0 0.0
  %201 = vmatprep.subr.mxu0 0.0
  %202 = vmatpush1.msra.mxu0 0.0
  %203 = vmatprep.subr.mxu0 0.0
  %204 = vmatpush1.msra.mxu0 0.0
  %205 = vmatprep.subr.mxu0 0.0
  %206 = vmatpush1.msra.mxu0 0.0
  %207 = vmatprep.mubr.f32.mxu0 0.0
  %208 = vmatmul.mubr.f32.gmra.mrb[0].mxu0 %v138
  %v209 = vpop.f32.mrb[0].mxu0
  %v210 = vadd.f32 0.0, %v209
  %v211 = vpop.f32.mrb[0].mxu0
  %v212 = vadd.f32 0.0, %v211
  %213 = vmatprep.mubr.f32.mxu0 0.0
  %214 = vmatmul.mubr.f32.gmra.mrb[0].mxu0 %v141
  %v215 = vpop.f32.mrb[0].mxu0
  %v216 = vadd.f32 0.0, %v215
  %v217 = vpop.f32.mrb[0].mxu0
  %v218 = vadd.f32 0.0, %v217
  %219 = vdwg.mxu0
  %v220 = vadd.f32 %v120, %v210
  %v221 = vadd.f32 %v121, %v212
  %v222 = vadd.f32 %v122, %v216
  %v223 = vadd.f32 %v123, %v218
  %s224 = scalar_lea.vmem %s1, 32
  %v225 = vld [vmem:[%s224] sm:$0xff]
  %v226 = vld [vmem:[%s224 + $0x8] sm:$0xff]
  %227 = vrot.lane.b32.xlu0 %v20, 96
  %v228 = vpop.permute.xlu0 %227
  %229 = vrot.lane.b32.xlu0 %v21, 96
  %v230 = vpop.permute.xlu0 %229
  %vm231 = vcmask 785408
  %v232 = vsel %vm231, %v228, %v230
  %v236 = vsel %vm26, %v225, 0
  %v239 = vsel %vm26, %v226, 0
  %241 = vmatprep.subr.mxu0 %v230
  %242 = vmatpush1.msra.mxu0 %v232
  %243 = vmatprep.subr.mxu0 0.0
  %244 = vmatpush1.msra.mxu0 0.0
  %245 = vmatprep.subr.mxu0 0.0
  %246 = vmatpush1.msra.mxu0 0.0
  %247 = vmatprep.subr.mxu0 0.0
  %248 = vmatpush1.msra.mxu0 0.0
  %249 = vmatprep.subr.mxu0 0.0
  %250 = vmatpush1.msra.mxu0 0.0
  %251 = vmatprep.subr.mxu0 0.0
  %252 = vmatpush1.msra.mxu0 0.0
  %253 = vmatprep.subr.mxu0 0.0
  %254 = vmatpush1.msra.mxu0 0.0
  %255 = vmatprep.subr.mxu0 0.0
  %256 = vmatpush1.msra.mxu0 0.0
  %257 = vmatprep.subr.mxu0 0.0
  %258 = vmatpush1.msra.mxu0 0.0
  %259 = vmatprep.subr.mxu0 0.0
  %260 = vmatpush1.msra.mxu0 0.0
  %261 = vmatprep.subr.mxu0 0.0
  %262 = vmatpush1.msra.mxu0 0.0
  %263 = vmatprep.subr.mxu0 0.0
  %264 = vmatpush1.msra.mxu0 0.0
  %265 = vmatprep.subr.mxu0 0.0
  %266 = vmatpush1.msra.mxu0 0.0
  %267 = vmatprep.subr.mxu0 0.0
  %268 = vmatpush1.msra.mxu0 0.0
  %269 = vmatprep.subr.mxu0 0.0
  %270 = vmatpush1.msra.mxu0 0.0
  %271 = vmatprep.subr.mxu0 0.0
  %272 = vmatpush1.msra.mxu0 0.0
  %273 = vmatprep.subr.mxu0 0.0
  %274 = vmatpush1.msra.mxu0 0.0
  %275 = vmatprep.subr.mxu0 0.0
  %276 = vmatpush1.msra.mxu0 0.0
  %277 = vmatprep.subr.mxu0 0.0
  %278 = vmatpush1.msra.mxu0 0.0
  %279 = vmatprep.subr.mxu0 0.0
  %280 = vmatpush1.msra.mxu0 0.0
  %281 = vmatprep.subr.mxu0 0.0
  %282 = vmatpush1.msra.mxu0 0.0
  %283 = vmatprep.subr.mxu0 0.0
  %284 = vmatpush1.msra.mxu0 0.0
  %285 = vmatprep.subr.mxu0 0.0
  %286 = vmatpush1.msra.mxu0 0.0
  %287 = vmatprep.subr.mxu0 0.0
  %288 = vmatpush1.msra.mxu0 0.0
  %289 = vmatprep.subr.mxu0 0.0
  %290 = vmatpush1.msra.mxu0 0.0
  %291 = vmatprep.subr.mxu0 0.0
  %292 = vmatpush1.msra.mxu0 0.0
  %293 = vmatprep.subr.mxu0 0.0
  %294 = vmatpush1.msra.mxu0 0.0
  %295 = vmatprep.subr.mxu0 0.0
  %296 = vmatpush1.msra.mxu0 0.0
  %297 = vmatprep.subr.mxu0 0.0
  %298 = vmatpush1.msra.mxu0 0.0
  %299 = vmatprep.subr.mxu0 0.0
  %300 = vmatpush1.msra.mxu0 0.0
  %301 = vmatprep.subr.mxu0 0.0
  %302 = vmatpush1.msra.mxu0 0.0
  %303 = vmatprep.subr.mxu0 0.0
  %304 = vmatpush1.msra.mxu0 0.0
  %305 = vmatprep.mubr.f32.mxu0 0.0
  %306 = vmatmul.mubr.f32.gmra.mrb[0].mxu0 %v236
  %v307 = vpop.f32.mrb[0].mxu0
  %v308 = vadd.f32 0.0, %v307
  %v309 = vpop.f32.mrb[0].mxu0
  %v310 = vadd.f32 0.0, %v309
  %311 = vmatprep.mubr.f32.mxu0 0.0
  %312 = vmatmul.mubr.f32.gmra.mrb[0].mxu0 %v239
  %v313 = vpop.f32.mrb[0].mxu0
  %v314 = vadd.f32 0.0, %v313
  %v315 = vpop.f32.mrb[0].mxu0
  %v316 = vadd.f32 0.0, %v315
  %317 = vdwg.mxu0
  %v318 = vadd.f32 %v220, %v308
  %v319 = vadd.f32 %v221, %v310
  %v320 = vadd.f32 %v222, %v314
  %v321 = vadd.f32 %v223, %v316
  %v322 = vmax.f32 %v318, 0.0
  %v323 = vmax.f32 %v319, 0.0
  %v324 = vmax.f32 %v320, 0.0
  %v325 = vmax.f32 %v321, 0.0
  %v326 = vld [vmem:[%s4] sm:$0xff]
  %v327 = vld [vmem:[%s4 + $0x8] sm:$0xff]
  %v328 = vld [vmem:[%s3] sm:$0xff]
  %v329 = vld [vmem:[%s3 + $0x8] sm:$0xff]
  %vm330 = vcmask 130048
  %v332 = vsel %vm330, %v328, 0
  %v335 = vsel %vm330, %v329, 0
  %337 = vmatprep.subr.mxu0 %v323
  %338 = vmatpush1.msra.mxu0 %v322
  %339 = vmatprep.subr.mxu0 %v325
  %340 = vmatpush1.msra.mxu0 %v324
  %341 = vmatprep.subr.mxu0 0.0
  %342 = vmatpush1.msra.mxu0 0.0
  %343 = vmatprep.subr.mxu0 0.0
  %344 = vmatpush1.msra.mxu0 0.0
  %345 = vmatprep.subr.mxu0 0.0
  %346 = vmatpush1.msra.mxu0 0.0
  %347 = vmatprep.subr.mxu0 0.0
  %348 = vmatpush1.msra.mxu0 0.0
  %349 = vmatprep.subr.mxu0 0.0
  %350 = vmatpush1.msra.mxu0 0.0
  %351 = vmatprep.subr.mxu0 0.0
  %352 = vmatpush1.msra.mxu0 0.0
  %353 = vmatprep.subr.mxu0 0.0
  %354 = vmatpush1.msra.mxu0 0.0
  %355 = vmatprep.subr.mxu0 0.0
  %356 = vmatpush1.msra.mxu0 0.0
  %357 = vmatprep.subr.mxu0 0.0
  %358 = vmatpush1.msra.mxu0 0.0
  %359 = vmatprep.subr.mxu0 0.0
  %360 = vmatpush1.msra.mxu0 0.0
  %361 = vmatprep.subr.mxu0 0.0
  %362 = vmatpush1.msra.mxu0 0.0
  %363 = vmatprep.subr.mxu0 0.0
  %364 = vmatpush1.msra.mxu0 0.0
  %365 = vmatprep.subr.mxu0 0.0
  %366 = vmatpush1.msra.mxu0 0.0
  %367 = vmatprep.subr.mxu0 0.0
  %368 = vmatpush1.msra.mxu0 0.0
  %369 = vmatprep.subr.mxu0 0.0
  %370 = vmatpush1.msra.mxu0 0.0
  %371 = vmatprep.subr.mxu0 0.0
  %372 = vmatpush1.msra.mxu0 0.0
  %373 = vmatprep.subr.mxu0 0.0
  %374 = vmatpush1.msra.mxu0 0.0
  %375 = vmatprep.subr.mxu0 0.0
  %376 = vmatpush1.msra.mxu0 0.0
  %377 = vmatprep.subr.mxu0 0.0
  %378 = vmatpush1.msra.mxu0 0.0
  %379 = vmatprep.subr.mxu0 0.0
  %380 = vmatpush1.msra.mxu0 0.0
  %381 = vmatprep.subr.mxu0 0.0
  %382 = vmatpush1.msra.mxu0 0.0
  %383 = vmatprep.subr.mxu0 0.0
  %384 = vmatpush1.msra.mxu0 0.0
  %385 = vmatprep.subr.mxu0 0.0
  %386 = vmatpush1.msra.mxu0 0.0
  %387 = vmatprep.subr.mxu0 0.0
  %388 = vmatpush1.msra.mxu0 0.0
  %389 = vmatprep.subr.mxu0 0.0
  %390 = vmatpush1.msra.mxu0 0.0
  %391 = vmatprep.subr.mxu0 0.0
  %392 = vmatpush1.msra.mxu0 0.0
  %393 = vmatprep.subr.mxu0 0.0
  %394 = vmatpush1.msra.mxu0 0.0
  %395 = vmatprep.subr.mxu0 0.0
  %396 = vmatpush1.msra.mxu0 0.0
  %397 = vmatprep.subr.mxu0 0.0
  %398 = vmatpush1.msra.mxu0 0.0
  %399 = vmatprep.subr.mxu0 0.0
  %400 = vmatpush1.msra.mxu0 0.0
  %401 = vmatprep.mubr.f32.mxu0 0.0
  %402 = vmatmul.mubr.f32.gmra.mrb[0].mxu0 %v332
  %v403 = vpop.f32.mrb[0].mxu0
  %v404 = vadd.f32 0.0, %v403
  %v405 = vpop.f32.mrb[0].mxu0
  %v406 = vadd.f32 0.0, %v405
  %407 = vmatprep.mubr.f32.mxu0 0.0
  %408 = vmatmul.mubr.f32.gmra.mrb[0].mxu0 %v335
  %v409 = vpop.f32.mrb[0].mxu0
  %v410 = vadd.f32 0.0, %v409
  %v411 = vpop.f32.mrb[0].mxu0
  %v412 = vadd.f32 0.0, %v411
  %413 = vdwg.mxu0
  %415 = vset.pattern.permute.xlu0 0
  %416 = vperm.xlu0 %415, %v326
  %v417 = vpop.permute.xlu0 %416
  %420 = vset.pattern.permute.xlu0 0
  %421 = vperm.xlu0 %420, %v327
  %v422 = vpop.permute.xlu0 %421
  %v424 = vadd.f32 %v417, %v404
  %v425 = vadd.f32 %v417, %v406
  %v426 = vadd.f32 %v422, %v410
  %v427 = vadd.f32 %v422, %v412
  %s428 = scalar_lea.vmem %s3, 16
  %v429 = vld [vmem:[%s428] sm:$0xff]
  %v430 = vld [vmem:[%s428 + $0x8] sm:$0xff]
  %435 = vrot.lane.b32.xlu0 %v322, 127
  %v436 = vpop.permute.xlu0 %435
  %437 = vrot.lane.b32.xlu0 %v323, 127
  %v438 = vpop.permute.xlu0 %437
  %439 = vrot.lane.b32.xlu0 %v324, 127
  %v440 = vpop.permute.xlu0 %439
  %441 = vrot.lane.b32.xlu0 %v325, 127
  %v442 = vpop.permute.xlu0 %441
  %vm443 = vcmask 1039360
  %v444 = vsel %vm443, %v436, %v438
  %v445 = vsel %vm443, %v440, %v442
  %v451 = vsel %vm330, %v429, 0
  %v454 = vsel %vm330, %v430, 0
  %456 = vmatprep.subr.mxu0 %v438
  %457 = vmatpush1.msra.mxu0 %v444
  %458 = vmatprep.subr.mxu0 %v442
  %459 = vmatpush1.msra.mxu0 %v445
  %460 = vmatprep.subr.mxu0 0.0
  %461 = vmatpush1.msra.mxu0 0.0
  %462 = vmatprep.subr.mxu0 0.0
  %463 = vmatpush1.msra.mxu0 0.0
  %464 = vmatprep.subr.mxu0 0.0
  %465 = vmatpush1.msra.mxu0 0.0
  %466 = vmatprep.subr.mxu0 0.0
  %467 = vmatpush1.msra.mxu0 0.0
  %468 = vmatprep.subr.mxu0 0.0
  %469 = vmatpush1.msra.mxu0 0.0
  %470 = vmatprep.subr.mxu0 0.0
  %471 = vmatpush1.msra.mxu0 0.0
  %472 = vmatprep.subr.mxu0 0.0
  %473 = vmatpush1.msra.mxu0 0.0
  %474 = vmatprep.subr.mxu0 0.0
  %475 = vmatpush1.msra.mxu0 0.0
  %476 = vmatprep.subr.mxu0 0.0
  %477 = vmatpush1.msra.mxu0 0.0
  %478 = vmatprep.subr.mxu0 0.0
  %479 = vmatpush1.msra.mxu0 0.0
  %480 = vmatprep.subr.mxu0 0.0
  %481 = vmatpush1.msra.mxu0 0.0
  %482 = vmatprep.subr.mxu0 0.0
  %483 = vmatpush1.msra.mxu0 0.0
  %484 = vmatprep.subr.mxu0 0.0
  %485 = vmatpush1.msra.mxu0 0.0
  %486 = vmatprep.subr.mxu0 0.0
  %487 = vmatpush1.msra.mxu0 0.0
  %488 = vmatprep.subr.mxu0 0.0
  %489 = vmatpush1.msra.mxu0 0.0
  %490 = vmatprep.subr.mxu0 0.0
  %491 = vmatpush1.msra.mxu0 0.0
  %492 = vmatprep.subr.mxu0 0.0
  %493 = vmatpush1.msra.mxu0 0.0
  %494 = vmatprep.subr.mxu0 0.0
  %495 = vmatpush1.msra.mxu0 0.0
  %496 = vmatprep.subr.mxu0 0.0
  %497 = vmatpush1.msra.mxu0 0.0
  %498 = vmatprep.subr.mxu0 0.0
  %499 = vmatpush1.msra.mxu0 0.0
  %500 = vmatprep.subr.mxu0 0.0
  %501 = vmatpush1.msra.mxu0 0.0
  %502 = vmatprep.subr.mxu0 0.0
  %503 = vmatpush1.msra.mxu0 0.0
  %504 = vmatprep.subr.mxu0 0.0
  %505 = vmatpush1.msra.mxu0 0.0
  %506 = vmatprep.subr.mxu0 0.0
  %507 = vmatpush1.msra.mxu0 0.0
  %508 = vmatprep.subr.mxu0 0.0
  %509 = vmatpush1.msra.mxu0 0.0
  %510 = vmatprep.subr.mxu0 0.0
  %511 = vmatpush1.msra.mxu0 0.0
  %512 = vmatprep.subr.mxu0 0.0
  %513 = vmatpush1.msra.mxu0 0.0
  %514 = vmatprep.subr.mxu0 0.0
  %515 = vmatpush1.msra.mxu0 0.0
  %516 = vmatprep.subr.mxu0 0.0
  %517 = vmatpush1.msra.mxu0 0.0
  %518 = vmatprep.subr.mxu0 0.0
  %519 = vmatpush1.msra.mxu0 0.0
  %520 = vmatprep.mubr.f32.mxu0 0.0
  %521 = vmatmul.mubr.f32.gmra.mrb[0].mxu0 %v451
  %v522 = vpop.f32.mrb[0].mxu0
  %v523 = vadd.f32 0.0, %v522
  %v524 = vpop.f32.mrb[0].mxu0
  %v525 = vadd.f32 0.0, %v524
  %526 = vmatprep.mubr.f32.mxu0 0.0
  %527 = vmatmul.mubr.f32.gmra.mrb[0].mxu0 %v454
  %v528 = vpop.f32.mrb[0].mxu0
  %v529 = vadd.f32 0.0, %v528
  %v530 = vpop.f32.mrb[0].mxu0
  %v531 = vadd.f32 0.0, %v530
  %532 = vdwg.mxu0
  %v533 = vadd.f32 %v424, %v523
  %v534 = vadd.f32 %v425, %v525
  %v535 = vadd.f32 %v426, %v529
  %v536 = vadd.f32 %v427, %v531
  %s537 = scalar_lea.vmem %s3, 32
  %v538 = vld [vmem:[%s537] sm:$0xff]
  %v539 = vld [vmem:[%s537 + $0x8] sm:$0xff]
  %540 = vrot.lane.b32.xlu0 %v322, 126
  %v541 = vpop.permute.xlu0 %540
  %542 = vrot.lane.b32.xlu0 %v323, 126
  %v543 = vpop.permute.xlu0 %542
  %544 = vrot.lane.b32.xlu0 %v324, 126
  %v545 = vpop.permute.xlu0 %544
  %546 = vrot.lane.b32.xlu0 %v325, 126
  %v547 = vpop.permute.xlu0 %546
  %vm548 = vcmask 1031168
  %v549 = vsel %vm548, %v541, %v543
  %v550 = vsel %vm548, %v545, %v547
  %v556 = vsel %vm330, %v538, 0
  %v559 = vsel %vm330, %v539, 0
  %561 = vmatprep.subr.mxu0 %v543
  %562 = vmatpush1.msra.mxu0 %v549
  %563 = vmatprep.subr.mxu0 %v547
  %564 = vmatpush1.msra.mxu0 %v550
  %565 = vmatprep.subr.mxu0 0.0
  %566 = vmatpush1.msra.mxu0 0.0
  %567 = vmatprep.subr.mxu0 0.0
  %568 = vmatpush1.msra.mxu0 0.0
  %569 = vmatprep.subr.mxu0 0.0
  %570 = vmatpush1.msra.mxu0 0.0
  %571 = vmatprep.subr.mxu0 0.0
  %572 = vmatpush1.msra.mxu0 0.0
  %573 = vmatprep.subr.mxu0 0.0
  %574 = vmatpush1.msra.mxu0 0.0
  %575 = vmatprep.subr.mxu0 0.0
  %576 = vmatpush1.msra.mxu0 0.0
  %577 = vmatprep.subr.mxu0 0.0
  %578 = vmatpush1.msra.mxu0 0.0
  %579 = vmatprep.subr.mxu0 0.0
  %580 = vmatpush1.msra.mxu0 0.0
  %581 = vmatprep.subr.mxu0 0.0
  %582 = vmatpush1.msra.mxu0 0.0
  %583 = vmatprep.subr.mxu0 0.0
  %584 = vmatpush1.msra.mxu0 0.0
  %585 = vmatprep.subr.mxu0 0.0
  %586 = vmatpush1.msra.mxu0 0.0
  %587 = vmatprep.subr.mxu0 0.0
  %588 = vmatpush1.msra.mxu0 0.0
  %589 = vmatprep.subr.mxu0 0.0
  %590 = vmatpush1.msra.mxu0 0.0
  %591 = vmatprep.subr.mxu0 0.0
  %592 = vmatpush1.msra.mxu0 0.0
  %593 = vmatprep.subr.mxu0 0.0
  %594 = vmatpush1.msra.mxu0 0.0
  %595 = vmatprep.subr.mxu0 0.0
  %596 = vmatpush1.msra.mxu0 0.0
  %597 = vmatprep.subr.mxu0 0.0
  %598 = vmatpush1.msra.mxu0 0.0
  %599 = vmatprep.subr.mxu0 0.0
  %600 = vmatpush1.msra.mxu0 0.0
  %601 = vmatprep.subr.mxu0 0.0
  %602 = vmatpush1.msra.mxu0 0.0
  %603 = vmatprep.subr.mxu0 0.0
  %604 = vmatpush1.msra.mxu0 0.0
  %605 = vmatprep.subr.mxu0 0.0
  %606 = vmatpush1.msra.mxu0 0.0
  %607 = vmatprep.subr.mxu0 0.0
  %608 = vmatpush1.msra.mxu0 0.0
  %609 = vmatprep.subr.mxu0 0.0
  %610 = vmatpush1.msra.mxu0 0.0
  %611 = vmatprep.subr.mxu0 0.0
  %612 = vmatpush1.msra.mxu0 0.0
  %613 = vmatprep.subr.mxu0 0.0
  %614 = vmatpush1.msra.mxu0 0.0
  %615 = vmatprep.subr.mxu0 0.0
  %616 = vmatpush1.msra.mxu0 0.0
  %617 = vmatprep.subr.mxu0 0.0
  %618 = vmatpush1.msra.mxu0 0.0
  %619 = vmatprep.subr.mxu0 0.0
  %620 = vmatpush1.msra.mxu0 0.0
  %621 = vmatprep.subr.mxu0 0.0
  %622 = vmatpush1.msra.mxu0 0.0
  %623 = vmatprep.subr.mxu0 0.0
  %624 = vmatpush1.msra.mxu0 0.0
  %625 = vmatprep.mubr.f32.mxu0 0.0
  %626 = vmatmul.mubr.f32.gmra.mrb[0].mxu0 %v556
  %v627 = vpop.f32.mrb[0].mxu0
  %v628 = vadd.f32 0.0, %v627
  %v629 = vpop.f32.mrb[0].mxu0
  %v630 = vadd.f32 0.0, %v629
  %631 = vmatprep.mubr.f32.mxu0 0.0
  %632 = vmatmul.mubr.f32.gmra.mrb[0].mxu0 %v559
  %v633 = vpop.f32.mrb[0].mxu0
  %v634 = vadd.f32 0.0, %v633
  %v635 = vpop.f32.mrb[0].mxu0
  %v636 = vadd.f32 0.0, %v635
  %637 = vdwg.mxu0
  %v638 = vadd.f32 %v533, %v628
  %v639 = vadd.f32 %v534, %v630
  %v640 = vadd.f32 %v535, %v634
  %v641 = vadd.f32 %v536, %v636
  %v642 = vmax.f32 %v638, 0.0
  %v643 = vmax.f32 %v639, 0.0
  %v644 = vmax.f32 %v640, 0.0
  %v645 = vmax.f32 %v641, 0.0
  %648 = vrot.lane.b32.xlu0 %v642, 126
  %v649 = vpop.permute.xlu0 %648
  %650 = vrot.lane.b32.xlu0 %v644, 126
  %v651 = vpop.permute.xlu0 %650
  %654 = vrot.lane.b32.xlu0 %v642, 124
  %v655 = vpop.permute.xlu0 %654
  %656 = vrot.lane.b32.xlu0 %v644, 124
  %v657 = vpop.permute.xlu0 %656
  %660 = vrot.lane.b32.xlu0 %v642, 122
  %v661 = vpop.permute.xlu0 %660
  %662 = vrot.lane.b32.xlu0 %v644, 122
  %v663 = vpop.permute.xlu0 %662
  %666 = vrot.lane.b32.xlu0 %v642, 120
  %v667 = vpop.permute.xlu0 %666
  %668 = vrot.lane.b32.xlu0 %v644, 120
  %v669 = vpop.permute.xlu0 %668
  %672 = vrot.lane.b32.xlu0 %v642, 118
  %v673 = vpop.permute.xlu0 %672
  %674 = vrot.lane.b32.xlu0 %v644, 118
  %v675 = vpop.permute.xlu0 %674
  %678 = vrot.lane.b32.xlu0 %v642, 116
  %v679 = vpop.permute.xlu0 %678
  %680 = vrot.lane.b32.xlu0 %v644, 116
  %v681 = vpop.permute.xlu0 %680
  %684 = vrot.lane.b32.xlu0 %v642, 114
  %v685 = vpop.permute.xlu0 %684
  %686 = vrot.lane.b32.xlu0 %v644, 114
  %v687 = vpop.permute.xlu0 %686
  %692 = vrot.lane.b32.xlu0 %v643, 112
  %v693 = vpop.permute.xlu0 %692
  %694 = vrot.lane.b32.xlu0 %v645, 112
  %v695 = vpop.permute.xlu0 %694
  %698 = vrot.lane.b32.xlu0 %v643, 110
  %v699 = vpop.permute.xlu0 %698
  %700 = vrot.lane.b32.xlu0 %v645, 110
  %v701 = vpop.permute.xlu0 %700
  %704 = vrot.lane.b32.xlu0 %v643, 108
  %v705 = vpop.permute.xlu0 %704
  %706 = vrot.lane.b32.xlu0 %v645, 108
  %v707 = vpop.permute.xlu0 %706
  %710 = vrot.lane.b32.xlu0 %v643, 106
  %v711 = vpop.permute.xlu0 %710
  %712 = vrot.lane.b32.xlu0 %v645, 106
  %v713 = vpop.permute.xlu0 %712
  %716 = vrot.lane.b32.xlu0 %v643, 104
  %v717 = vpop.permute.xlu0 %716
  %718 = vrot.lane.b32.xlu0 %v645, 104
  %v719 = vpop.permute.xlu0 %718
  %722 = vrot.lane.b32.xlu0 %v643, 102
  %v723 = vpop.permute.xlu0 %722
  %724 = vrot.lane.b32.xlu0 %v645, 102
  %v725 = vpop.permute.xlu0 %724
  %vm728 = vcmask 113664
  %v729 = vsel %vm728, %v642, %v649
  %v730 = vsel %vm728, %v644, %v651
  %vm731 = vcmask 228352
  %v732 = vsel %vm731, %v729, %v655
  %v733 = vsel %vm731, %v730, %v657
  %vm734 = vcmask 343040
  %v735 = vsel %vm734, %v732, %v661
  %v736 = vsel %vm734, %v733, %v663
  %vm737 = vcmask 457728
  %v738 = vsel %vm737, %v735, %v667
  %v739 = vsel %vm737, %v736, %v669
  %vm740 = vcmask 572416
  %v741 = vsel %vm740, %v738, %v673
  %v742 = vsel %vm740, %v739, %v675
  %vm743 = vcmask 687104
  %v744 = vsel %vm743, %v741, %v679
  %v745 = vsel %vm743, %v742, %v681
  %vm746 = vcmask 801792
  %v747 = vsel %vm746, %v744, %v685
  %v748 = vsel %vm746, %v745, %v687
  %v749 = vsel %vm133, %v747, %v693
  %v750 = vsel %vm133, %v748, %v695
  %v751 = vsel %vm548, %v749, %v699
  %v752 = vsel %vm548, %v750, %v701
  %vm753 = vcmask 97280
  %v754 = vsel %vm753, %v699, %v705
  %v755 = vsel %vm753, %v701, %v707
  %vm756 = vcmask 211968
  %v757 = vsel %vm756, %v754, %v711
  %v758 = vsel %vm756, %v755, %v713
  %vm759 = vcmask 326656
  %v760 = vsel %vm759, %v757, %v717
  %v761 = vsel %vm759, %v758, %v719
  %vm762 = vcmask 441344
  %v763 = vsel %vm762, %v760, %v723
  %v764 = vsel %vm762, %v761, %v725
  %765 = vst [vmem:[%s5] sm:$0xff] %v751
  %vm766 = vcmask 556032
  %767 = vst.msk [vmem:[%s5 + $0x8] sm:$0xff] %vm766, %v763
  %768 = vst [vmem:[%s5 + $0x10] sm:$0xff] %v752
  %769 = vst.msk [vmem:[%s5 + $0x18] sm:$0xff] %vm766, %v764
  // Predicated region
  $region22: #{aux_conv_forward.1} parent=0 // pred_check
    _
  $region23: #{aux_conv_forward.1} parent=0 // pred_check_branch
    %771 = sbr.rel (0) target = $region25
  $region24: #{aux_conv_forward.1} parent=0 // pred_region
    _
  $region25: #{aux_conv_forward.1} parent=0 // pred_fallthru
    _
  // Predicated region
  $region26: #{aux_conv_forward.1} parent=0 // pred_check
    _
  $region27: #{aux_conv_forward.1} parent=0 // pred_check_branch
    %773 = sbr.rel (0) target = $region29
  $region28: #{aux_conv_forward.1} parent=0 // pred_region
    _
  $region29: #{aux_conv_forward.1} parent=0 // pred_fallthru
    _

</llo_original>
